<compile_context>
chip_gen: v6e
topology: v6e:2x2x1
jax: 0.10.0
libtpu: 0.0.40
codegen_flags: <defaults>
</compile_context>

<pallas_src>
import jax
import jax.numpy as jnp
from jax.experimental import pallas as pl
from jax.experimental.pallas import tpu as pltpu

K_CONV = 256   # conv output channels (k in the module) -- only used for parameter shapes
R_CONV = 7     # conv kernel width (r in the module)
PAD = 3        # conv padding


def _location_attention_kernel(
    enc_ref,      # VMEM (M, H)      compute dtype  encoder_output rows (flattened b,t)
    im2col_ref,   # VMEM (M, 7)      compute dtype  shifted prev_attention taps
    hattn_ref,    # VMEM (BT, H)     f32            hidden proj + all folded biases
    enc_len_ref,  # VMEM (BT, 1)     int32          valid lengths per batch row
    w_e_ref,      # VMEM (H, H)      compute dtype  encoder_output_proj
    w_cp_ref,     # VMEM (7, H)      compute dtype  fused conv1d @ prev_attn_proj
    w_o_ref,      # VMEM (1, H)      f32            out.weight as a row
    out_ref,      # VMEM (BT, T)     f32            attention weights (lane-dense)
):
    bt, t = out_ref.shape
    h = w_e_ref.shape[1]

    # Two MXU matmuls over M = BT*T flattened rows, f32 accumulation.
    lin = (jnp.dot(enc_ref[...], w_e_ref[...], preferred_element_type=jnp.float32)
           + jnp.dot(im2col_ref[...], w_cp_ref[...], preferred_element_type=jnp.float32))

    # (M, H) -> (BT, T, H) is a leading-dim split (layout preserving); add the per-batch
    # hidden/bias term broadcast over T, then tanh (EUP).
    res = jnp.tanh(lin.reshape(bt, t, h) + hattn_ref[...][:, None, :])

    # Out-projection to a scalar per (b, t): elementwise multiply + lane (H) reduction,
    # keeping the MXU free.  The result lands with T on the lane axis, so the softmax
    # below is lane-dense.  b_o is omitted: a constant shift cannot change the softmax.
    energy = jnp.sum(res * w_o_ref[...][None, :, :], axis=-1)          # (BT, T)

    # Masked per-row softmax over t < enc_len[b]; invalid rows stay exactly zero.
    idx = jax.lax.broadcasted_iota(jnp.int32, (bt, t), 1)
    valid = idx < enc_len_ref[...]                                     # (BT, T)
    masked = jnp.where(valid, energy, -jnp.inf)
    m = jnp.max(masked, axis=-1, keepdims=True)                        # (BT, 1)
    e = jnp.where(valid, jnp.exp(energy - m), 0.0)
    s = jnp.sum(e, axis=-1, keepdims=True)
    denom = jnp.where(s > 0.0, s, 1.0)        # enc_len == 0 -> all-zero row (no NaN)
    out_ref[...] = e * pl.reciprocal(denom, approx=False)


def _pick_b_tile(batch, seq, hidden, itemsize, budget_bytes=8 * 1024 * 1024):
    """Largest batch tile whose double-buffered activation blocks fit the budget.
    Prefers the whole batch; otherwise a multiple of 8 that divides the batch."""
    def act_bytes(bt):
        m = bt * seq
        one = ((m * hidden + m * R_CONV) * itemsize
               + (bt * hidden + bt + bt * seq) * 4)
        return 2 * one                       # double buffered by the pipeline
    if act_bytes(batch) <= budget_bytes:
        return batch
    for bt in range((batch // 8) * 8, 0, -8):
        if batch % bt == 0 and act_bytes(bt) <= budget_bytes:
            return bt
    # TODO(synk): pad the batch to a multiple of 8 when no aligned divisor fits VMEM.
    return batch


def location_attention(hidden, encoder_output, enc_len, prev_attention, params,
                       *, compute_dtype=jnp.float32, b_tile=None):
    """Pallas implementation of LocationAttention.forward. Returns (B, T, 1) float32."""
    L, B, H = hidden.shape
    T = encoder_output.shape[0]
    R = R_CONV
    f32 = jnp.float32

    w_h, b_h, w_e, b_e, w_c, b_c, w_p, b_p, w_o, b_o = params

    # ---- one-time algebraic fusions & hoists (plain XLA; exact) --------------------
    # conv1d followed by prev_attn_proj is linear->linear: fuse into a (7, H) matrix.
    w_cp = w_c.astype(f32) @ w_p.astype(f32)                          # (7, H)
    b_cp = b_c.astype(f32) @ w_p.astype(f32) + b_p.astype(f32)        # (1, H)

    # hidden.permute/bmm(add_mask) == mean over decoder layers; project it once for the
    # whole batch (MXU-efficient (B,H)@(H,H)) and fold every additive bias into it.
    hmean = jnp.mean(hidden.astype(f32), axis=0)                      # (B, H)
    hidden_attn = (hmean @ w_h.astype(f32)
                   + b_h.astype(f32) + b_e.astype(f32) + b_cp)        # (B, H)
    # b_o is intentionally dropped: softmax is invariant to a uniform shift.

    # ---- layout plumbing ------------------------------------------------------------
    enc_flat = (jnp.transpose(encoder_output, (1, 0, 2))
                .reshape(B * T, H).astype(compute_dtype))             # (B*T, H)

    # im2col for Conv1d(1, k, 7, padding=3): 7 shifted copies of prev_attention.
    padded = jnp.pad(prev_attention.astype(f32), ((0, 0), (PAD, PAD)))
    im2col = jnp.stack([padded[:, j:j + T] for j in range(R)], axis=-1)
    im2col = im2col.reshape(B * T, R).astype(compute_dtype)           # (B*T, 7)

    enc_len_2d = enc_len.astype(jnp.int32).reshape(B, 1)              # (B, 1)

    w_e_c = w_e.astype(compute_dtype)
    w_cp_c = w_cp.astype(compute_dtype)
    w_o_row = w_o.astype(f32).reshape(1, H)

    # ---- tiling ---------------------------------------------------------------------
    itemsize = jnp.dtype(compute_dtype).itemsize
    if b_tile is None:
        b_tile = _pick_b_tile(B, T, H, itemsize)
    assert B % b_tile == 0, "b_tile must divide the batch"
    m_rows = b_tile * T
    grid = (B // b_tile,)

    # VMEM budget: double-buffered activation/output blocks + (revolving) weight blocks.
    act = 2 * ((m_rows * H + m_rows * R) * itemsize
               + (b_tile * H + b_tile + b_tile * T) * 4)
    wgt = 2 * ((H * H + R * H) * itemsize + H * 4)
    vmem_limit = int(min(max(2 * (act + wgt) + (2 << 20), 32 << 20), 64 << 20))

    out2d = pl.pallas_call(
        _location_attention_kernel,
        out_shape=jax.ShapeDtypeStruct((B, T), f32),
        grid=grid,
        in_specs=[
            pl.BlockSpec((m_rows, H), lambda b: (b, 0)),
            pl.BlockSpec((m_rows, R), lambda b: (b, 0)),
            pl.BlockSpec((b_tile, H), lambda b: (b, 0)),
            pl.BlockSpec((b_tile, 1), lambda b: (b, 0)),
            # weights: constant block index -> fetched once, reused across grid steps
            pl.BlockSpec((H, H), lambda b: (0, 0)),
            pl.BlockSpec((R, H), lambda b: (0, 0)),
            pl.BlockSpec((1, H), lambda b: (0, 0)),
        ],
        out_specs=pl.BlockSpec((b_tile, T), lambda b: (b, 0)),
        compiler_params=pltpu.CompilerParams(
            dimension_semantics=("parallel",),   # batch tiles are independent (v7x: 2 TCs)
            vmem_limit_bytes=vmem_limit),
    )(enc_flat, im2col, hidden_attn, enc_len_2d, w_e_c, w_cp_c, w_o_row)

    # Module returns (B, T, 1); trailing unit dim added outside the kernel (layout plumbing).
    return out2d[..., None]


def reference(hidden, encoder_output, enc_len, prev_attention, params):
    """Pure-JAX mirror of the PyTorch forward (for a correctness check)."""
    w_h, b_h, w_e, b_e, w_c, b_c, w_p, b_p, w_o, b_o = params
    L, B, H = hidden.shape
    T = encoder_output.shape[0]
    enc = jnp.transpose(encoder_output, (1, 0, 2))                             # (B, T, H)
    hmean = jnp.mean(hidden, axis=0)                                           # (B, H)
    hidden_attn = hmean @ w_h + b_h[0]                                         # (B, H)
    padded = jnp.pad(prev_attention, ((0, 0), (PAD, PAD)))
    im2col = jnp.stack([padded[:, j:j + T] for j in range(R_CONV)], axis=-1)   # (B, T, 7)
    conv = im2col @ w_c + b_c[0]                                               # (B, T, K)
    conv_proj = conv @ w_p + b_p[0]                                            # (B, T, H)
    enc_attn = enc @ w_e + b_e[0]                                              # (B, T, H)
    res = jnp.tanh(enc_attn + hidden_attn[:, None, :] + conv_proj)
    energy = (res @ w_o + b_o[0])[..., 0]                                      # (B, T)
    idx = jnp.arange(T)[None, :]
    valid = idx < enc_len[:, None]
    m = jnp.max(jnp.where(valid, energy, -jnp.inf), axis=1, keepdims=True)
    e = jnp.where(valid, jnp.exp(energy - m), 0.0)
    w = e / jnp.sum(e, axis=1, keepdims=True)
    return w[..., None]


def init_params(key, H):
    """Deterministic synthetic parameters (PyTorch Linear/Conv weights, stored
    pre-transposed as (in, out) matrices)."""
    ks = jax.random.split(key, 10)
    s = 0.1
    w_h = jax.random.normal(ks[0], (H, H), jnp.float32) * s
    b_h = jax.random.normal(ks[1], (1, H), jnp.float32) * s
    w_e = jax.random.normal(ks[2], (H, H), jnp.float32) * s
    b_e = jax.random.normal(ks[3], (1, H), jnp.float32) * s
    w_c = jax.random.normal(ks[4], (R_CONV, K_CONV), jnp.float32) * s   # conv1d weight^T
    b_c = jax.random.normal(ks[5], (1, K_CONV), jnp.float32) * s
    w_p = jax.random.normal(ks[6], (K_CONV, H), jnp.float32) * s
    b_p = jax.random.normal(ks[7], (1, H), jnp.float32) * s
    w_o = jax.random.normal(ks[8], (H, 1), jnp.float32) * s
    b_o = jax.random.normal(ks[9], (1, 1), jnp.float32) * s
    # NOTE: self.proj / self.sigmoid in the PyTorch module are unused in forward().
    return (w_h, b_h, w_e, b_e, w_c, b_c, w_p, b_p, w_o, b_o)


if __name__ == "__main__":
    B, T, H, L = 2, 8, 32, 2   # batch, seq, hidden_size, decoder_layer

    key = jax.random.PRNGKey(0)
    k_h, k_e, k_p, k_w = jax.random.split(key, 4)

    hidden = jax.random.normal(k_h, (L, B, H), jnp.float32)
    encoder_output = jax.random.normal(k_e, (T, B, H), jnp.float32)
    prev_attention = jax.nn.softmax(jax.random.normal(k_p, (B, T), jnp.float32), axis=-1)
    enc_len = jnp.array([T, 5], dtype=jnp.int32)

    params = init_params(k_w, H)
    ref = reference(hidden, encoder_output, enc_len, prev_attention, params)

    # f32 path (exact up to reassociation of the fused/hoisted linear algebra).
    out = location_attention(hidden, encoder_output, enc_len, prev_attention, params)
    out = jax.block_until_ready(out)
    assert out.shape == (B, T, 1)
    assert jnp.allclose(out, ref, atol=2e-5, rtol=1e-4), "f32 kernel mismatch vs reference"

    # bf16 MXU-operand path (recommended on v6e/v7x); accumulation stays f32.
    out_bf16 = location_attention(hidden, encoder_output, enc_len, prev_attention, params,
                                  compute_dtype=jnp.bfloat16)
    out_bf16 = jax.block_until_ready(out_bf16)
    assert out_bf16.shape == (B, T, 1)
    assert jnp.allclose(out_bf16, ref, atol=3e-2, rtol=0), "bf16 kernel mismatch vs reference"

    print("KERNEL_OK")
</pallas_src>

<mosaic_0001>
module attributes {stable_mosaic.version = 11 : i64} {
  func.func @_location_attention_kernel(%arg0: i32, %arg1: memref<16x32xf32, #tpu.memory_space<vmem>>, %arg2: memref<16x7xf32, #tpu.memory_space<vmem>>, %arg3: memref<2x32xf32, #tpu.memory_space<vmem>>, %arg4: memref<2x1xi32, #tpu.memory_space<vmem>>, %arg5: memref<32x32xf32, #tpu.memory_space<vmem>>, %arg6: memref<7x32xf32, #tpu.memory_space<vmem>>, %arg7: memref<1x32xf32, #tpu.memory_space<vmem>>, %arg8: memref<2x8xf32, #tpu.memory_space<vmem>>) attributes {dimension_semantics = [#tpu.dimension_semantics<parallel>], iteration_bounds = array<i64: 1>, scalar_prefetch = 0 : i64, scratch_operands = 0 : i64, tpu.core_type = #tpu.core_type<tc>, window_params = [{transform_indices = @transform_0, window_bounds = array<i64: 16, 32>}, {transform_indices = @transform_1, window_bounds = array<i64: 16, 7>}, {transform_indices = @transform_2, window_bounds = array<i64: 2, 32>}, {transform_indices = @transform_3, window_bounds = array<i64: 2, 1>}, {pipeline_mode = #tpu.pipeline_mode<synchronous>, transform_indices = @transform_4, window_bounds = array<i64: 32, 32>}, {pipeline_mode = #tpu.pipeline_mode<synchronous>, transform_indices = @transform_5, window_bounds = array<i64: 7, 32>}, {pipeline_mode = #tpu.pipeline_mode<synchronous>, transform_indices = @transform_6, window_bounds = array<i64: 1, 32>}, {transform_indices = @transform_7, window_bounds = array<i64: 2, 8>}]} {
    %c0 = arith.constant 0 : index
    %c0_0 = arith.constant 0 : index
    %0 = vector.load %arg1[%c0, %c0_0] : memref<16x32xf32, #tpu.memory_space<vmem>>, vector<16x32xf32>
    %c0_1 = arith.constant 0 : index
    %c0_2 = arith.constant 0 : index
    %1 = vector.load %arg5[%c0_1, %c0_2] : memref<32x32xf32, #tpu.memory_space<vmem>>, vector<32x32xf32>
    %cst = arith.constant dense<0.000000e+00> : vector<16x32xf32>
    %2 = tpu.matmul %0, %1, %cst {dimension_numbers = #tpu.dot_dimension_numbers<[1], [0], [0], [1], [0, 0, 1, 1], [], []>} : vector<16x32xf32>, vector<32x32xf32>, vector<16x32xf32> -> vector<16x32xf32>
    %c0_3 = arith.constant 0 : index
    %c0_4 = arith.constant 0 : index
    %3 = vector.load %arg2[%c0_3, %c0_4] : memref<16x7xf32, #tpu.memory_space<vmem>>, vector<16x7xf32>
    %c0_5 = arith.constant 0 : index
    %c0_6 = arith.constant 0 : index
    %4 = vector.load %arg6[%c0_5, %c0_6] : memref<7x32xf32, #tpu.memory_space<vmem>>, vector<7x32xf32>
    %cst_7 = arith.constant dense<0.000000e+00> : vector<16x32xf32>
    %5 = tpu.matmul %3, %4, %cst_7 {dimension_numbers = #tpu.dot_dimension_numbers<[1], [0], [0], [1], [0, 0, 1, 1], [], []>} : vector<16x7xf32>, vector<7x32xf32>, vector<16x32xf32> -> vector<16x32xf32>
    %6 = arith.addf %2, %5 : vector<16x32xf32>
    %7 = vector.shape_cast %6 : vector<16x32xf32> to vector<2x8x32xf32>
    %c0_8 = arith.constant 0 : index
    %c0_9 = arith.constant 0 : index
    %8 = vector.load %arg3[%c0_8, %c0_9] : memref<2x32xf32, #tpu.memory_space<vmem>>, vector<2x32xf32>
    %9 = vector.shape_cast %8 : vector<2x32xf32> to vector<2x1x32xf32>
    %10 = vector.broadcast %9 : vector<2x1x32xf32> to vector<2x8x32xf32>
    %11 = arith.addf %7, %10 : vector<2x8x32xf32>
    %12 = math.tanh %11 : vector<2x8x32xf32>
    %c0_10 = arith.constant 0 : index
    %c0_11 = arith.constant 0 : index
    %13 = vector.load %arg7[%c0_10, %c0_11] : memref<1x32xf32, #tpu.memory_space<vmem>>, vector<1x32xf32>
    %14 = vector.shape_cast %13 : vector<1x32xf32> to vector<1x1x32xf32>
    %15 = vector.broadcast %14 : vector<1x1x32xf32> to vector<2x8x32xf32>
    %16 = arith.mulf %12, %15 : vector<2x8x32xf32>
    %cst_12 = arith.constant dense<0.000000e+00> : vector<2x8xf32>
    %17 = vector.multi_reduction <add>, %16, %cst_12 [2] : vector<2x8x32xf32> to vector<2x8xf32>
    %18 = tpu.iota {dimensions = array<i32: 1>} : vector<2x8xi32>
    %c0_13 = arith.constant 0 : index
    %c0_14 = arith.constant 0 : index
    %19 = vector.load %arg4[%c0_13, %c0_14] : memref<2x1xi32, #tpu.memory_space<vmem>>, vector<2x1xi32>
    %20 = vector.broadcast %19 : vector<2x1xi32> to vector<2x8xi32>
    %21 = arith.cmpi slt, %18, %20 : vector<2x8xi32>
    %cst_15 = arith.constant 0xFF800000 : f32
    %22 = vector.broadcast %cst_15 : f32 to vector<2x8xf32>
    %23 = arith.select %21, %17, %22 : vector<2x8xi1>, vector<2x8xf32>
    %cst_16 = arith.constant dense<0xFF800000> : vector<2xf32>
    %24 = vector.multi_reduction <maximumf>, %23, %cst_16 [1] : vector<2x8xf32> to vector<2xf32>
    %25 = vector.shape_cast %24 : vector<2xf32> to vector<2x1xf32>
    %26 = vector.broadcast %25 : vector<2x1xf32> to vector<2x8xf32>
    %27 = arith.subf %17, %26 : vector<2x8xf32>
    %28 = math.exp %27 : vector<2x8xf32>
    %cst_17 = arith.constant 0.000000e+00 : f32
    %29 = vector.broadcast %cst_17 : f32 to vector<2x8xf32>
    %30 = arith.select %21, %28, %29 : vector<2x8xi1>, vector<2x8xf32>
    %cst_18 = arith.constant dense<0.000000e+00> : vector<2xf32>
    %31 = vector.multi_reduction <add>, %30, %cst_18 [1] : vector<2x8xf32> to vector<2xf32>
    %32 = vector.shape_cast %31 : vector<2xf32> to vector<2x1xf32>
    %cst_19 = arith.constant 0.000000e+00 : f32
    %33 = vector.broadcast %cst_19 : f32 to vector<2x1xf32>
    %34 = arith.cmpf ogt, %32, %33 : vector<2x1xf32>
    %cst_20 = arith.constant 1.000000e+00 : f32
    %35 = vector.broadcast %cst_20 : f32 to vector<2x1xf32>
    %36 = arith.select %34, %32, %35 : vector<2x1xi1>, vector<2x1xf32>
    %37 = tpu.reciprocal %36 : vector<2x1xf32> -> vector<2x1xf32>
    %38 = vector.broadcast %37 : vector<2x1xf32> to vector<2x8xf32>
    %39 = arith.mulf %30, %38 : vector<2x8xf32>
    %c0_21 = arith.constant 0 : index
    %c0_22 = arith.constant 0 : index
    %40 = vector.load %arg8[%c0_21, %c0_22] : memref<2x8xf32, #tpu.memory_space<vmem>>, vector<2x8xf32>
    tpu.vector_store %arg8[%c0_21, %c0_22], %39 {strides = array<i32>} : memref<2x8xf32, #tpu.memory_space<vmem>>, vector<2x8xf32>,
    return
  }
  func.func @transform_0(%arg0: i32) -> (i32, i32) {
    %c0_i32 = arith.constant 0 : i32
    %c0_i32_0 = arith.constant 0 : i32
    return %arg0, %c0_i32 : i32, i32
  }
  func.func @transform_1(%arg0: i32) -> (i32, i32) {
    %c0_i32 = arith.constant 0 : i32
    %c0_i32_0 = arith.constant 0 : i32
    return %arg0, %c0_i32 : i32, i32
  }
  func.func @transform_2(%arg0: i32) -> (i32, i32) {
    %c0_i32 = arith.constant 0 : i32
    %c0_i32_0 = arith.constant 0 : i32
    return %arg0, %c0_i32 : i32, i32
  }
  func.func @transform_3(%arg0: i32) -> (i32, i32) {
    %c0_i32 = arith.constant 0 : i32
    %c0_i32_0 = arith.constant 0 : i32
    return %arg0, %c0_i32 : i32, i32
  }
  func.func @transform_4(%arg0: i32) -> (i32, i32) {
    %c0_i32 = arith.constant 0 : i32
    %c0_i32_0 = arith.constant 0 : i32
    %c0_i32_1 = arith.constant 0 : i32
    return %c0_i32, %c0_i32_0 : i32, i32
  }
  func.func @transform_5(%arg0: i32) -> (i32, i32) {
    %c0_i32 = arith.constant 0 : i32
    %c0_i32_0 = arith.constant 0 : i32
    %c0_i32_1 = arith.constant 0 : i32
    return %c0_i32, %c0_i32_0 : i32, i32
  }
  func.func @transform_6(%arg0: i32) -> (i32, i32) {
    %c0_i32 = arith.constant 0 : i32
    %c0_i32_0 = arith.constant 0 : i32
    %c0_i32_1 = arith.constant 0 : i32
    return %c0_i32, %c0_i32_0 : i32, i32
  }
  func.func @transform_7(%arg0: i32) -> (i32, i32) {
    %c0_i32 = arith.constant 0 : i32
    %c0_i32_0 = arith.constant 0 : i32
    return %arg0, %c0_i32 : i32, i32
  }
}

</mosaic_0001>

<llo_original>
// kernel: tpu_custom_call.1
$region0: #{tpu_custom_call.1}
  #allocation0 [shape = 'u32[]', space=smem, size = 0x4, offset = 0x4, fixed_abs, tag = 'smem constant byte address 0x4 - core index']
  #allocation1 [shape = 'u32[144,128]{1,0:T(1,128)}', space=vmem, size = 0x12000, scoped, tag = 'internal scratch']
  %s0 = inlined_call_operand.hbm [shape: f32[16,32], index: 0, kind: input, shape index: {}]
  %s1 = inlined_call_operand.vmem [shape: f32[16,7], index: 1, kind: input, shape index: {}]
  %s2 = inlined_call_operand.vmem [shape: f32[2,32], index: 2, kind: input, shape index: {}]
  %s3 = inlined_call_operand.vmem [shape: s32[2,1], index: 3, kind: input, shape index: {}]
  %s4 = inlined_call_operand.vmem [shape: f32[32,32], index: 4, kind: input, shape index: {}]
  %s5 = inlined_call_operand.hbm [shape: f32[7,32], index: 5, kind: input, shape index: {}]
  %s6 = inlined_call_operand.vmem [shape: f32[1,32], index: 6, kind: input, shape index: {}]
  %s7 = inlined_call_operand.hbm [shape: f32[2,8], index: 7, kind: output, shape index: {}]
  %s8 = sld [smem:[#allocation0]]
  $region46: #{tpu_custom_call.1} parent=0
    _
  %s10 = ssub.s32 1, %s8
  %s11 = scalar_select 0, %s10, %s8
  $region1: #{tpu_custom_call.1} parent=0
    #allocation2 [shape = 'u8[8192]{0}', space=vmem, size = 0x2000, scoped, tag = 'input window, operand 0, single buffered']
    #allocation3 [shape = 's32[1]{0}', space=sflag, size = 0x4, scoped, tag = 'scoped memory for tpu_custom_call.1']
    #allocation4 [shape = 's32[1]{0}', space=sflag, size = 0x4, scoped, tag = 'scoped memory for tpu_custom_call.1']
    #allocation5 [shape = 'u8[4096]{0}', space=vmem, size = 0x1000, scoped, tag = 'input window, operand 5, single buffered']
    #allocation6 [shape = 's32[1]{0}', space=sflag, size = 0x4, scoped, tag = 'scoped memory for tpu_custom_call.1']
    #allocation7 [shape = 'u8[1024]{0}', space=vmem, size = 0x400, scoped, tag = 'output window, operand 0, single buffered']
    %12 = vsyncpa [#allocation3], 0
    %13 = vsyncpa [#allocation6], 0
    %14 = vsyncpa [#allocation4], 0
    // Predicated region
    $region2: #{tpu_custom_call.1} parent=1 // pred_check
      _
    $region3: #{tpu_custom_call.1} parent=1 // pred_check_branch
      %16 = sbr.rel (0) target = $region5
    $region4: #{tpu_custom_call.1} parent=1 // pred_region
      %s18 = ssub.s32 256, 256
      %19 = vsyncadd [#allocation3], %s18
      %s20 = sshll.u32 [#allocation2], 4
      %s21 = int_to_ptr.vmem [resolvable:$true] %s20
      %26 = dma.hbm_to_vmem [thread:$0]  %s0, 256, %s21, [#allocation3], 128, 128, 8
    $region5: #{tpu_custom_call.1} parent=1 // pred_fallthru
      _
    // Predicated region
    $region6: #{tpu_custom_call.1} parent=1 // pred_check
      _
    $region7: #{tpu_custom_call.1} parent=1 // pred_check_branch
      %28 = sbr.rel (0) target = $region9
    $region8: #{tpu_custom_call.1} parent=1 // pred_region
      _
    $region9: #{tpu_custom_call.1} parent=1 // pred_fallthru
      _
    // Predicated region
    $region10: #{tpu_custom_call.1} parent=1 // pred_check
      _
    $region11: #{tpu_custom_call.1} parent=1 // pred_check_branch
      %30 = sbr.rel (0) target = $region13
    $region12: #{tpu_custom_call.1} parent=1 // pred_region
      _
    $region13: #{tpu_custom_call.1} parent=1 // pred_fallthru
      _
    // Predicated region
    $region14: #{tpu_custom_call.1} parent=1 // pred_check
      _
    $region15: #{tpu_custom_call.1} parent=1 // pred_check_branch
      %32 = sbr.rel (0) target = $region17
    $region16: #{tpu_custom_call.1} parent=1 // pred_region
      _
    $region17: #{tpu_custom_call.1} parent=1 // pred_fallthru
      _
    // Predicated region
    $region18: #{tpu_custom_call.1} parent=1 // pred_check
      _
    $region19: #{tpu_custom_call.1} parent=1 // pred_check_branch
      %34 = sbr.rel (0) target = $region21
    $region20: #{tpu_custom_call.1} parent=1 // pred_region
      _
    $region21: #{tpu_custom_call.1} parent=1 // pred_fallthru
      _
    // Predicated region
    $region22: #{tpu_custom_call.1} parent=1 // pred_check
      _
    $region23: #{tpu_custom_call.1} parent=1 // pred_check_branch
      %36 = sbr.rel (0) target = $region25
    $region24: #{tpu_custom_call.1} parent=1 // pred_region
      %s38 = ssub.s32 128, 128
      %39 = vsyncadd [#allocation6], %s38
      %s41 = sshll.u32 [#allocation5], 4
      %s42 = int_to_ptr.vmem [resolvable:$true] %s41
      %44 = dma.hbm_to_vmem [thread:$0]  %s5, 128, %s42, [#allocation6]
    $region25: #{tpu_custom_call.1} parent=1 // pred_fallthru
      _
    // Predicated region
    $region26: #{tpu_custom_call.1} parent=1 // pred_check
      _
    $region27: #{tpu_custom_call.1} parent=1 // pred_check_branch
      %46 = sbr.rel (0) target = $region29
    $region28: #{tpu_custom_call.1} parent=1 // pred_region
      _
    $region29: #{tpu_custom_call.1} parent=1 // pred_fallthru
      _
    // Predicated region
    $region30: #{tpu_custom_call.1} parent=1 // pred_check
      _
    $region31: #{tpu_custom_call.1} parent=1 // pred_check_branch
      %48 = sbr.rel (0) target = $region33
    $region32: #{tpu_custom_call.1} parent=1 // pred_region
      %49 = dma.done [#allocation3], 256
    $region33: #{tpu_custom_call.1} parent=1 // pred_fallthru
      _
    // Predicated region
    $region34: #{tpu_custom_call.1} parent=1 // pred_check
      _
    $region35: #{tpu_custom_call.1} parent=1 // pred_check_branch
      %51 = sbr.rel (0) target = $region37
    $region36: #{tpu_custom_call.1} parent=1 // pred_region
      %52 = dma.done [#allocation6], 128
    $region37: #{tpu_custom_call.1} parent=1 // pred_fallthru
      _
    %v53 = vld [vmem:[#allocation2] sm:$0xff]
    %v54 = vld [vmem:[#allocation2 + $0x8] sm:$0xff]
    %v55 = vld [vmem:[%s4] sm:$0xff]
    %v56 = vld [vmem:[%s4 + $0x8] sm:$0xff]
    %v57 = vld [vmem:[%s4 + $0x10] sm:$0xff]
    %v58 = vld [vmem:[%s4 + $0x18] sm:$0xff]
    %v59 = vld [vmem:[%s1] sm:$0xff]
    %v60 = vld [vmem:[%s1 + $0x8] sm:$0xff]
    %v61 = vld [vmem:[#allocation5] sm:$0x7f]
    %vm62 = vcmask 56320
    %v64 = vsel %vm62, %v59, 0
    %v67 = vsel %vm62, %v60, 0
    %vm69 = vcmask 1046528
    %v71 = vsel %vm69, %v61, 0
    %73 = vmatprep.subr.mxu0 0.0
    %74 = vmatpush1.msra.mxu0 0.0
    %75 = vmatprep.subr.mxu0 0.0
    %76 = vmatpush1.msra.mxu0 0.0
    %77 = vmatprep.subr.mxu0 0.0
    %78 = vmatpush1.msra.mxu0 0.0
    %79 = vmatprep.subr.mxu0 0.0
    %80 = vmatpush1.msra.mxu0 0.0
    %81 = vmatprep.subr.mxu0 0.0
    %82 = vmatpush1.msra.mxu0 0.0
    %83 = vmatprep.subr.mxu0 0.0
    %84 = vmatpush1.msra.mxu0 0.0
    %85 = vmatprep.subr.mxu0 0.0
    %86 = vmatpush1.msra.mxu0 0.0
    %87 = vmatprep.subr.mxu0 0.0
    %88 = vmatpush1.msra.mxu0 0.0
    %89 = vmatprep.subr.mxu0 0.0
    %90 = vmatpush1.msra.mxu0 0.0
    %91 = vmatprep.subr.mxu0 0.0
    %92 = vmatpush1.msra.mxu0 0.0
    %93 = vmatprep.subr.mxu0 0.0
    %94 = vmatpush1.msra.mxu0 0.0
    %95 = vmatprep.subr.mxu0 0.0
    %96 = vmatpush1.msra.mxu0 0.0
    %97 = vmatprep.subr.mxu0 0.0
    %98 = vmatpush1.msra.mxu0 0.0
    %99 = vmatprep.subr.mxu0 0.0
    %100 = vmatpush1.msra.mxu0 0.0
    %101 = vmatprep.subr.mxu0 0.0
    %102 = vmatpush1.msra.mxu0 0.0
    %103 = vmatprep.subr.mxu0 0.0
    %104 = vmatpush1.msra.mxu0 %v71
    %105 = vmatprep.subr.mxu0 0.0
    %106 = vmatpush2.msra.mxu0 0.0
    %107 = vmatprep.subr.mxu0 0.0
    %108 = vmatpush2.msra.mxu0 0.0
    %109 = vmatprep.subr.mxu0 0.0
    %110 = vmatpush2.msra.mxu0 0.0
    %111 = vmatprep.subr.mxu0 0.0
    %112 = vmatpush2.msra.mxu0 0.0
    %113 = vmatprep.subr.mxu0 0.0
    %114 = vmatpush2.msra.mxu0 0.0
    %115 = vmatprep.subr.mxu0 0.0
    %116 = vmatpush2.msra.mxu0 0.0
    %117 = vmatprep.subr.mxu0 0.0
    %118 = vmatpush2.msra.mxu0 0.0
    %119 = vmatprep.subr.mxu0 0.0
    %120 = vmatpush2.msra.mxu0 0.0
    %121 = vmatprep.subr.mxu0 0.0
    %122 = vmatpush2.msra.mxu0 0.0
    %123 = vmatprep.subr.mxu0 0.0
    %124 = vmatpush2.msra.mxu0 0.0
    %125 = vmatprep.subr.mxu0 0.0
    %126 = vmatpush2.msra.mxu0 0.0
    %127 = vmatprep.subr.mxu0 0.0
    %128 = vmatpush2.msra.mxu0 0.0
    %129 = vmatprep.subr.mxu0 0.0
    %130 = vmatpush2.msra.mxu0 0.0
    %131 = vmatprep.subr.mxu0 0.0
    %132 = vmatpush2.msra.mxu0 0.0
    %133 = vmatprep.subr.mxu0 0.0
    %134 = vmatpush2.msra.mxu0 0.0
    %135 = vmatprep.subr.mxu0 0.0
    %136 = vmatpush2.msra.mxu0 0.0
    %137 = vmatprep.mubr.f32.mxu0 0.0
    %138 = vmatmul.mubr.f32.gmra.mxu0 %v64
    %v139 = vpop.f32.mrf.mxu0
    %v140 = vadd.f32 0.0, %v139
    %v141 = vpop.f32.mrf.mxu0
    %142 = vmatprep.mubr.f32.mxu0 0.0
    %143 = vmatmul.mubr.f32.gmra.mxu0 %v67
    %v144 = vpop.f32.mrf.mxu0
    %v145 = vadd.f32 0.0, %v144
    %v146 = vpop.f32.mrf.mxu0
    %147 = vdwg.mxu0
    %vm148 = vcmask 261120
    %v150 = vsel %vm148, %v53, 0
    %v153 = vsel %vm148, %v54, 0
    %155 = vmatprep.subr.mxu0 0.0
    %156 = vmatpush1.msra.mxu0 0.0
    %157 = vmatprep.subr.mxu0 0.0
    %158 = vmatpush1.msra.mxu0 0.0
    %159 = vmatprep.subr.mxu0 0.0
    %160 = vmatpush1.msra.mxu0 0.0
    %161 = vmatprep.subr.mxu0 0.0
    %162 = vmatpush1.msra.mxu0 0.0
    %163 = vmatprep.subr.mxu0 0.0
    %164 = vmatpush1.msra.mxu0 0.0
    %165 = vmatprep.subr.mxu0 0.0
    %166 = vmatpush1.msra.mxu0 0.0
    %167 = vmatprep.subr.mxu0 0.0
    %168 = vmatpush1.msra.mxu0 0.0
    %169 = vmatprep.subr.mxu0 0.0
    %170 = vmatpush1.msra.mxu0 0.0
    %171 = vmatprep.subr.mxu0 0.0
    %172 = vmatpush1.msra.mxu0 0.0
    %173 = vmatprep.subr.mxu0 0.0
    %174 = vmatpush1.msra.mxu0 0.0
    %175 = vmatprep.subr.mxu0 0.0
    %176 = vmatpush1.msra.mxu0 0.0
    %177 = vmatprep.subr.mxu0 0.0
    %178 = vmatpush1.msra.mxu0 0.0
    %179 = vmatprep.subr.mxu0 0.0
    %180 = vmatpush1.msra.mxu0 %v58
    %181 = vmatprep.subr.mxu0 0.0
    %182 = vmatpush1.msra.mxu0 %v57
    %183 = vmatprep.subr.mxu0 0.0
    %184 = vmatpush1.msra.mxu0 %v56
    %185 = vmatprep.subr.mxu0 0.0
    %186 = vmatpush1.msra.mxu0 %v55
    %187 = vmatprep.subr.mxu0 0.0
    %188 = vmatpush2.msra.mxu0 0.0
    %189 = vmatprep.subr.mxu0 0.0
    %190 = vmatpush2.msra.mxu0 0.0
    %191 = vmatprep.subr.mxu0 0.0
    %192 = vmatpush2.msra.mxu0 0.0
    %193 = vmatprep.subr.mxu0 0.0
    %194 = vmatpush2.msra.mxu0 0.0
    %195 = vmatprep.subr.mxu0 0.0
    %196 = vmatpush2.msra.mxu0 0.0
    %197 = vmatprep.subr.mxu0 0.0
    %198 = vmatpush2.msra.mxu0 0.0
    %199 = vmatprep.subr.mxu0 0.0
    %200 = vmatpush2.msra.mxu0 0.0
    %201 = vmatprep.subr.mxu0 0.0
    %202 = vmatpush2.msra.mxu0 0.0
    %203 = vmatprep.subr.mxu0 0.0
    %204 = vmatpush2.msra.mxu0 0.0
    %205 = vmatprep.subr.mxu0 0.0
    %206 = vmatpush2.msra.mxu0 0.0
    %207 = vmatprep.subr.mxu0 0.0
    %208 = vmatpush2.msra.mxu0 0.0
    %209 = vmatprep.subr.mxu0 0.0
    %210 = vmatpush2.msra.mxu0 0.0
    %211 = vmatprep.subr.mxu0 0.0
    %212 = vmatpush2.msra.mxu0 0.0
    %213 = vmatprep.subr.mxu0 0.0
    %214 = vmatpush2.msra.mxu0 0.0
    %215 = vmatprep.subr.mxu0 0.0
    %216 = vmatpush2.msra.mxu0 0.0
    %217 = vmatprep.subr.mxu0 0.0
    %218 = vmatpush2.msra.mxu0 0.0
    %219 = vmatprep.mubr.f32.mxu0 0.0
    %220 = vmatmul.mubr.f32.gmra.mxu0 %v150
    %v221 = vpop.f32.mrf.mxu0
    %v222 = vadd.f32 %v140, %v221
    %v223 = vpop.f32.mrf.mxu0
    %224 = vmatprep.mubr.f32.mxu0 0.0
    %225 = vmatmul.mubr.f32.gmra.mxu0 %v153
    %v226 = vpop.f32.mrf.mxu0
    %v227 = vadd.f32 %v145, %v226
    %v228 = vpop.f32.mrf.mxu0
    %229 = vdwg.mxu0
    %v230 = vld [vmem:[%s2] sm:$0x3]
    %v233 = vunpack.c.l.s4 1966171168
    %v234 = vunpack.c.0.s8 %v233
    %v235 = vlaneseq
    %v236 = vshrl.u32 %v235, 7
    %v237 = vsub.s32 %v234, %v236
    %v238 = vrot.slane %v230, %v237
    %v239 = vcombine.high %v238, %v238
    %v241 = vunpack.c.l.s4 1966171168
    %v242 = vunpack.c.0.s8 %v241
    %v243 = vlaneseq
    %v244 = vshrl.u32 %v243, 7
    %v245 = vsub.s32 %v242, %v244
    %v246 = vrot.slane %v238, %v245
    %v248 = vunpack.c.l.s4 1966171168
    %v249 = vunpack.c.0.s8 %v248
    %v250 = vlaneseq
    %v251 = vshrl.u32 %v250, 7
    %v252 = vsub.s32 %v249, %v251
    %v253 = vrot.slane %v239, %v252
    %v254 = vlaneseq
    %v255 = vshrl.u32 %v254, 7
    %v256 = vsub.s32 0, %v255
    %v257 = vrot.slane %v246, %v256
    %v258 = vlaneseq
    %v259 = vshrl.u32 %v258, 7
    %v260 = vsub.s32 0, %v259
    %v261 = vrot.slane %v253, %v260
    %v264 = vadd.f32 %v222, %v257
    %v265 = vadd.f32 %v227, %v261
    %v266 = vtanh.pop %v264
    %v267 = vtanh.pop %v265
    %v268 = vld [vmem:[%s6] sm:$0x1]
    %v270 = vlaneseq
    %v271 = vshrl.u32 %v270, 7
    %v272 = vsub.s32 0, %v271
    %v273 = vrot.slane %v268, %v272
    %v275 = vmul.f32 %v266, %v273
    %v276 = vmul.f32 %v267, %v273
    %v277 = vsel %vm148, %v275, 0.0
    %278 = vadd.xlane.f32.xlu0 %v277
    %v279 = vpop.xlane.xlu0 %278
    %v280 = vsel %vm148, %v276, 0.0
    %281 = vadd.xlane.f32.xlu0 %v280
    %v282 = vpop.xlane.xlu0 %281
    %v283 = vlaneseq
    %v284 = vand.u32 %v283, 127
    %v285 = vld [vmem:[%s3] sm:$0x3]
    %286 = vset.pattern.permute.xlu0 0
    %287 = vperm.xlu0 %286, %v285
    %v288 = vpop.permute.xlu0 %287
    %vm289 = vcmp.lt.s32.totalorder %v284, %v288
    %v292 = vlaneseq
    %v293 = vshrl.u32 %v292, 7
    %v294 = vsub.s32 %v284, %v293
    %v295 = vrot.slane %v279, %v294
    %v296 = vlaneseq
    %v297 = vshrl.u32 %v296, 7
    %v298 = vsub.s32 %v284, %v297
    %v299 = vrot.slane %v282, %v298
    %vm300 = vcmask 1041409
    %v301 = vsel %vm300, %v299, %v295
    %v303 = vsel %vm289, %v301, -inf
    %vm304 = vcmask 58368
    %v305 = vsel %vm304, %v303, -inf
    %306 = vmax.xlane.f32.xlu0 %v305
    %v307 = vpop.xlane.xlu0 %306
    %v309 = vlaneseq
    %v310 = vshrl.u32 %v309, 7
    %v311 = vsub.s32 0, %v310
    %v312 = vrot.slane %v307, %v311
    %v313 = vlaneseq
    %v314 = vshrl.u32 %v313, 7
    %v315 = vsub.s32 1, %v314
    %v316 = vrot.slane %v307, %v315
    %v319 = vsub.f32 %v279, %v312
    %v320 = vsub.f32 %v282, %v316
    %v321 = vmul.f32 %v319, 1.442695
    %v322 = vpow.pop %v321
    %v323 = vmul.f32 %v320, 1.442695
    %v324 = vpow.pop %v323
    %327 = vset.pattern.permute.xlu0 0
    %328 = vperm.xlu0 %327, %v322
    %v329 = vpop.permute.xlu0 %328
    %330 = vset.pattern.permute.xlu0 0
    %331 = vperm.xlu0 %330, %v324
    %v332 = vpop.permute.xlu0 %331
    %v333 = vlaneseq
    %v334 = vshrl.u32 %v333, 7
    %v335 = vsub.s32 %v284, %v334
    %v336 = vrot.slane %v329, %v335
    %v337 = vlaneseq
    %v338 = vshrl.u32 %v337, 7
    %v339 = vsub.s32 %v284, %v338
    %v340 = vrot.slane %v332, %v339
    %v341 = vsel %vm300, %v340, %v336
    %v343 = vsel %vm289, %v341, 0.0
    %v344 = vsel %vm304, %v343, 0.0
    %345 = vadd.xlane.f32.xlu0 %v344
    %v346 = vpop.xlane.xlu0 %345
    %vm347 = vcmp.gt.f32.partialorder %v346, 0.0
    %v348 = vsel %vm347, %v346, 1.0
    %v349 = vrcp.pop %v348
    %v350 = vmul.f32 %v343, %v349
    %351 = vst.msk [vmem:[#allocation7] sm:$0x3] %vm304, %v350
    // Predicated region
    $region38: #{tpu_custom_call.1} parent=1 // pred_check
      _
    $region39: #{tpu_custom_call.1} parent=1 // pred_check_branch
      %353 = sbr.rel (0) target = $region41
    $region40: #{tpu_custom_call.1} parent=1 // pred_region
      %s355 = ssub.s32 32, 32
      %356 = vsyncadd [#allocation4], %s355
      %s358 = sshll.u32 [#allocation7], 4
      %s359 = int_to_ptr.vmem [resolvable:$true] %s358
      %361 = dma.vmem_to_hbm [thread:$0]  %s359, 32, %s7, [#allocation4]
    $region41: #{tpu_custom_call.1} parent=1 // pred_fallthru
      _
    // Predicated region
    $region42: #{tpu_custom_call.1} parent=1 // pred_check
      _
    $region43: #{tpu_custom_call.1} parent=1 // pred_check_branch
      %363 = sbr.rel (0) target = $region45
    $region44: #{tpu_custom_call.1} parent=1 // pred_region
      %364 = dma.done [#allocation4], 32
    $region45: #{tpu_custom_call.1} parent=1 // pred_fallthru
      _
    %365 = vsyncpa [#allocation3], 1
    %366 = vsyncpa [#allocation6], 1
    %367 = vsyncpa [#allocation4], 1

</llo_original>
